<compile_context>
chip_gen: v5e
topology: v5e:2x2
jax: 0.10.0
libtpu: 0.0.40
codegen_flags: <defaults>
</compile_context>

<pallas_src>
import jax
import jax.numpy as jnp
from jax.experimental import pallas as pl
from jax.experimental.pallas import tpu as pltpu

STATE_DIM = 4      # CartPole-v0 observation size
HIDDEN_DIM = 128
ACTION_DIM = 2     # CartPole-v0 action space
PAD_DIM = 128      # lane-dense padded action width (full vreg lane width)

_NEG_BIAS = -1e9   # large-negative (not -inf) bias for padding columns


def _round_up(n, m):
    return ((n + m - 1) // m) * m


def _policy_net_kernel(x_ref, w1_ref, b1_ref, w2_ref, b2_ref, out_ref):
    # fc1 + ReLU  (MXU matmul, f32 accumulate)
    x = x_ref[...]                                                 # (TB, STATE_DIM)
    h = jnp.dot(x, w1_ref[...], preferred_element_type=jnp.float32) + b1_ref[...]
    h = jnp.maximum(h, 0.0)                                        # (TB, HIDDEN_DIM)

    # fc2 into the lane-dense padded action slab
    logits = jnp.dot(h, w2_ref[...], preferred_element_type=jnp.float32) + b2_ref[...]

    # numerically stable softmax over the padded 128-lane action dim;
    # padded columns carry a -1e9 bias -> exp underflows to exactly 0.
    m = jnp.max(logits, axis=-1, keepdims=True)
    e = jnp.exp(logits - m)
    denom = jnp.sum(e, axis=-1, keepdims=True)

    # EUP approx reciprocal + one Newton step (r <- r * (2 - d*r)) for ~f32 accuracy
    r = pl.reciprocal(denom, approx=True)
    r = r * (2.0 - denom * r)

    out_ref[...] = (e * r).astype(out_ref.dtype)                   # (TB, PAD_DIM)


def policy_net_forward(x, w1, b1, w2, b2, *, tb_max=512):
    """x: (B, STATE_DIM) f32 -> (B, ACTION_DIM) action probabilities.

    Weights are stored as (in_features, out_features). The batch is tiled into
    TB-row blocks (TB a multiple of 8, <= tb_max); fc2 params are padded to a
    lane-dense 128-wide slab inside this wrapper.
    """
    B = x.shape[0]

    # Pad fc2 params to lane-dense width: zero weights + large-negative bias on
    # the padding columns so softmax gives them exactly 0 probability.
    w2p = jnp.zeros((HIDDEN_DIM, PAD_DIM), w2.dtype).at[:, :ACTION_DIM].set(w2)
    b2p = jnp.full((1, PAD_DIM), _NEG_BIAS, b2.dtype).at[:, :ACTION_DIM].set(b2)

    # Batch tiling: TB multiple of 8 (f32 sublane rule), batch padded to TB.
    TB = min(tb_max, _round_up(B, 8))
    Bp = _round_up(B, TB)
    if Bp != B:
        x = jnp.pad(x, ((0, Bp - B), (0, 0)))

    out = pl.pallas_call(
        _policy_net_kernel,
        out_shape=jax.ShapeDtypeStruct((Bp, PAD_DIM), jnp.float32),
        grid=(Bp // TB,),
        in_specs=[
            # batch stream walks the grid axis
            pl.BlockSpec((TB, STATE_DIM), lambda i: (i, 0)),
            # weights / biases stay resident (same block every iteration)
            pl.BlockSpec((STATE_DIM, HIDDEN_DIM), lambda i: (0, 0)),
            pl.BlockSpec((1, HIDDEN_DIM), lambda i: (0, 0)),
            pl.BlockSpec((HIDDEN_DIM, PAD_DIM), lambda i: (0, 0)),
            pl.BlockSpec((1, PAD_DIM), lambda i: (0, 0)),
        ],
        out_specs=pl.BlockSpec((TB, PAD_DIM), lambda i: (i, 0)),
        compiler_params=pltpu.CompilerParams(
            # batch tiles are independent -> shard across TCs on v7x
            dimension_semantics=("parallel",),
        ),
    )(x, w1, b1, w2p, b2p)

    # slice off batch padding and the lane-dense action padding
    return out[:B, :ACTION_DIM]


def init_params(key):
    """Deterministic init mirroring torch.nn.Linear (uniform ±1/sqrt(fan_in)).
    Weights are stored as (in_features, out_features)."""
    k1, k2, k3, k4 = jax.random.split(key, 4)
    bound1 = 1.0 / jnp.sqrt(STATE_DIM)
    bound2 = 1.0 / jnp.sqrt(HIDDEN_DIM)
    w1 = jax.random.uniform(k1, (STATE_DIM, HIDDEN_DIM), jnp.float32, -bound1, bound1)
    b1 = jax.random.uniform(k2, (1, HIDDEN_DIM), jnp.float32, -bound1, bound1)
    w2 = jax.random.uniform(k3, (HIDDEN_DIM, ACTION_DIM), jnp.float32, -bound2, bound2)
    b2 = jax.random.uniform(k4, (1, ACTION_DIM), jnp.float32, -bound2, bound2)
    return w1, b1, w2, b2


if __name__ == "__main__":
    key = jax.random.PRNGKey(0)
    kx, kp = jax.random.split(key)

    batch = 16
    x = jax.random.normal(kx, (batch, STATE_DIM), jnp.float32)
    w1, b1, w2, b2 = init_params(kp)

    # tb_max=8 forces a 2-step batch grid even at this small demo size, so the
    # tiled/pipelined path is exercised.
    probs = policy_net_forward(x, w1, b1, w2, b2, tb_max=8)
    probs = jax.block_until_ready(probs)

    # reference check in plain JAX
    h_ref = jnp.maximum(x @ w1 + b1, 0.0)
    logits_ref = h_ref @ w2 + b2
    ref = jax.nn.softmax(logits_ref, axis=1)
    assert probs.shape == (batch, ACTION_DIM)
    assert jnp.allclose(probs, ref, atol=1e-5, rtol=1e-5)
    assert jnp.allclose(jnp.sum(probs, axis=1), 1.0, atol=1e-5)

    print("KERNEL_OK")
</pallas_src>

<mosaic_0001>
module attributes {stable_mosaic.version = 11 : i64} {
  func.func @_policy_net_kernel(%arg0: i32, %arg1: memref<8x4xf32, #tpu.memory_space<vmem>>, %arg2: memref<4x128xf32, #tpu.memory_space<vmem>>, %arg3: memref<1x128xf32, #tpu.memory_space<vmem>>, %arg4: memref<128x128xf32, #tpu.memory_space<vmem>>, %arg5: memref<1x128xf32, #tpu.memory_space<vmem>>, %arg6: memref<8x128xf32, #tpu.memory_space<vmem>>) attributes {dimension_semantics = [#tpu.dimension_semantics<parallel>], iteration_bounds = array<i64: 2>, scalar_prefetch = 0 : i64, scratch_operands = 0 : i64, tpu.core_type = #tpu.core_type<tc>, window_params = [{transform_indices = @transform_0, window_bounds = array<i64: 8, 4>}, {pipeline_mode = #tpu.pipeline_mode<synchronous>, transform_indices = @transform_1, window_bounds = array<i64: 4, 128>}, {pipeline_mode = #tpu.pipeline_mode<synchronous>, transform_indices = @transform_2, window_bounds = array<i64: 1, 128>}, {pipeline_mode = #tpu.pipeline_mode<synchronous>, transform_indices = @transform_3, window_bounds = array<i64: 128, 128>}, {pipeline_mode = #tpu.pipeline_mode<synchronous>, transform_indices = @transform_4, window_bounds = array<i64: 1, 128>}, {transform_indices = @transform_5, window_bounds = array<i64: 8, 128>}]} {
    %c0 = arith.constant 0 : index
    %c0_0 = arith.constant 0 : index
    %0 = vector.load %arg1[%c0, %c0_0] : memref<8x4xf32, #tpu.memory_space<vmem>>, vector<8x4xf32>
    %c0_1 = arith.constant 0 : index
    %c0_2 = arith.constant 0 : index
    %1 = vector.load %arg2[%c0_1, %c0_2] : memref<4x128xf32, #tpu.memory_space<vmem>>, vector<4x128xf32>
    %cst = arith.constant dense<0.000000e+00> : vector<8x128xf32>
    %2 = tpu.matmul %0, %1, %cst {dimension_numbers = #tpu.dot_dimension_numbers<[1], [0], [0], [1], [0, 0, 1, 1], [], []>} : vector<8x4xf32>, vector<4x128xf32>, vector<8x128xf32> -> vector<8x128xf32>
    %c0_3 = arith.constant 0 : index
    %c0_4 = arith.constant 0 : index
    %3 = vector.load %arg3[%c0_3, %c0_4] : memref<1x128xf32, #tpu.memory_space<vmem>>, vector<1x128xf32>
    %4 = vector.broadcast %3 : vector<1x128xf32> to vector<8x128xf32>
    %5 = arith.addf %2, %4 : vector<8x128xf32>
    %cst_5 = arith.constant 0.000000e+00 : f32
    %6 = vector.broadcast %cst_5 : f32 to vector<8x128xf32>
    %7 = arith.maximumf %5, %6 : vector<8x128xf32>
    %c0_6 = arith.constant 0 : index
    %c0_7 = arith.constant 0 : index
    %8 = vector.load %arg4[%c0_6, %c0_7] : memref<128x128xf32, #tpu.memory_space<vmem>>, vector<128x128xf32>
    %cst_8 = arith.constant dense<0.000000e+00> : vector<8x128xf32>
    %9 = tpu.matmul %7, %8, %cst_8 {dimension_numbers = #tpu.dot_dimension_numbers<[1], [0], [0], [1], [0, 0, 1, 1], [], []>} : vector<8x128xf32>, vector<128x128xf32>, vector<8x128xf32> -> vector<8x128xf32>
    %c0_9 = arith.constant 0 : index
    %c0_10 = arith.constant 0 : index
    %10 = vector.load %arg5[%c0_9, %c0_10] : memref<1x128xf32, #tpu.memory_space<vmem>>, vector<1x128xf32>
    %11 = vector.broadcast %10 : vector<1x128xf32> to vector<8x128xf32>
    %12 = arith.addf %9, %11 : vector<8x128xf32>
    %cst_11 = arith.constant dense<0xFF800000> : vector<8xf32>
    %13 = vector.multi_reduction <maximumf>, %12, %cst_11 [1] : vector<8x128xf32> to vector<8xf32>
    %14 = vector.shape_cast %13 : vector<8xf32> to vector<8x1xf32>
    %15 = vector.broadcast %14 : vector<8x1xf32> to vector<8x128xf32>
    %16 = arith.subf %12, %15 : vector<8x128xf32>
    %17 = math.exp %16 : vector<8x128xf32>
    %cst_12 = arith.constant dense<0.000000e+00> : vector<8xf32>
    %18 = vector.multi_reduction <add>, %17, %cst_12 [1] : vector<8x128xf32> to vector<8xf32>
    %19 = vector.shape_cast %18 : vector<8xf32> to vector<8x1xf32>
    %20 = tpu.reciprocal %19 {approx = true} : vector<8x1xf32> -> vector<8x1xf32>
    %21 = arith.mulf %19, %20 : vector<8x1xf32>
    %cst_13 = arith.constant 2.000000e+00 : f32
    %22 = vector.broadcast %cst_13 : f32 to vector<8x1xf32>
    %23 = arith.subf %22, %21 : vector<8x1xf32>
    %24 = arith.mulf %20, %23 : vector<8x1xf32>
    %25 = vector.broadcast %24 : vector<8x1xf32> to vector<8x128xf32>
    %26 = arith.mulf %17, %25 : vector<8x128xf32>
    %c0_14 = arith.constant 0 : index
    %c0_15 = arith.constant 0 : index
    %27 = vector.load %arg6[%c0_14, %c0_15] : memref<8x128xf32, #tpu.memory_space<vmem>>, vector<8x128xf32>
    tpu.vector_store %arg6[%c0_14, %c0_15], %26 {strides = array<i32>} : memref<8x128xf32, #tpu.memory_space<vmem>>, vector<8x128xf32>,
    return
  }
  func.func @transform_0(%arg0: i32) -> (i32, i32) {
    %c0_i32 = arith.constant 0 : i32
    %c0_i32_0 = arith.constant 0 : i32
    return %arg0, %c0_i32 : i32, i32
  }
  func.func @transform_1(%arg0: i32) -> (i32, i32) {
    %c0_i32 = arith.constant 0 : i32
    %c0_i32_0 = arith.constant 0 : i32
    %c0_i32_1 = arith.constant 0 : i32
    return %c0_i32, %c0_i32_0 : i32, i32
  }
  func.func @transform_2(%arg0: i32) -> (i32, i32) {
    %c0_i32 = arith.constant 0 : i32
    %c0_i32_0 = arith.constant 0 : i32
    %c0_i32_1 = arith.constant 0 : i32
    return %c0_i32, %c0_i32_0 : i32, i32
  }
  func.func @transform_3(%arg0: i32) -> (i32, i32) {
    %c0_i32 = arith.constant 0 : i32
    %c0_i32_0 = arith.constant 0 : i32
    %c0_i32_1 = arith.constant 0 : i32
    return %c0_i32, %c0_i32_0 : i32, i32
  }
  func.func @transform_4(%arg0: i32) -> (i32, i32) {
    %c0_i32 = arith.constant 0 : i32
    %c0_i32_0 = arith.constant 0 : i32
    %c0_i32_1 = arith.constant 0 : i32
    return %c0_i32, %c0_i32_0 : i32, i32
  }
  func.func @transform_5(%arg0: i32) -> (i32, i32) {
    %c0_i32 = arith.constant 0 : i32
    %c0_i32_0 = arith.constant 0 : i32
    return %arg0, %c0_i32 : i32, i32
  }
}

</mosaic_0001>

<llo_original>
// kernel: tpu_custom_call.1
$region0: #{tpu_custom_call.1}
  #allocation0 [shape = 'u32[]', space=smem, size = 0x4, offset = 0x4, fixed_abs, tag = 'smem constant byte address 0x4 - core index']
  #allocation1 [shape = 'u32[72,128]{1,0:T(1,128)}', space=vmem, size = 0x9000, scoped, tag = 'internal scratch']
  %s0 = inlined_call_operand.vmem [shape: f32[16,4], index: 0, kind: input, shape index: {}]
  %s1 = inlined_call_operand.vmem [shape: f32[4,128], index: 1, kind: input, shape index: {}]
  %s2 = inlined_call_operand.vmem [shape: f32[1,128], index: 2, kind: input, shape index: {}]
  %s3 = inlined_call_operand.hbm [shape: f32[128,128], index: 3, kind: input, shape index: {}]
  %s4 = inlined_call_operand.vmem [shape: f32[1,128], index: 4, kind: input, shape index: {}]
  %s5 = inlined_call_operand.hbm [shape: f32[16,128], index: 5, kind: output, shape index: {}]
  %s6 = sld [smem:[#allocation0]]
  $region57: #{tpu_custom_call.1} parent=0
    _
  %s8 = ssub.s32 1, %s6
  %s9 = scalar_select 0, %s8, %s6
  $region1: #{tpu_custom_call.1} parent=0
    #allocation2 [shape = 'u8[65536]{0}', space=vmem, size = 0x10000, scoped, tag = 'input window, operand 3, single buffered']
    #allocation3 [shape = 's32[2]{0}', space=sflag, size = 0x8, scoped, tag = 'scoped memory for tpu_custom_call.1']
    #allocation4 [shape = 's32[2]{0}', space=sflag, size = 0x8, scoped, tag = 'scoped memory for tpu_custom_call.1']
    #allocation5 [shape = 'u8[8192]{0}', space=vmem, size = 0x2000, scoped, tag = 'output window, operand 0']
    %10 = vsyncpa [#allocation3], 0
    %11 = vsyncpa [#allocation4], 0
    %s12 = scalar_lea.sflag [#allocation4], 1
    %13 = vsyncpa %s12, 0
    loop: start=0, step=1, limit=4
    $region2: #{tpu_custom_call.1} parent=1 // loop_pre_header
      _
    $region3: #{tpu_custom_call.1} parent=1 // loop_header
      %s15 = sphi 0, %s19
      %p16 = scmp.ge.s32.totalorder %s15, 4
      %s25 = sphi 0, %s27
      %s28 = sphi 0, %s25
      %s29 = sphi 0, %s28
      %s45 = sphi 0, %s29
      %s49 = sphi 0, %s49
      %s51 = sphi 0, %s49
      %s52 = sphi 0, %s51
      %s66 = sphi 0, %s52
      %s70 = sphi 0, %s70
      %s72 = sphi 0, %s70
      %s73 = sphi 0, %s72
      %s87 = sphi 0, %s73
      %s91 = sphi 0, %s91
      %s93 = sphi 0, %s91
      %s94 = sphi 0, %s93
      %s108 = sphi 0, %s94
      %s112 = sphi 0, %s112
      %s114 = sphi 0, %s112
      %s115 = sphi 0, %s114
      %s129 = sphi 0, %s115
      %s135 = sphi 0, %s137
      %s138 = sphi 0, %s135
      %s139 = sphi 0, %s138
      %s155 = sphi 0, %s139
    $region4: #{tpu_custom_call.1} parent=1 // loop_header_branch
      %18 = sbr.rel (%p16) target = $region8
    $region5: #{tpu_custom_call.1} parent=1 // loop_body
      %s20 = ssub.s32 %s15, 1
      %s21 = ssub.s32 %s15, 2
      %s22 = sadd.s32 %s15, 1
      %s23 = ssub.s32 %s15, %s22
      %p24 = scmp.eq.s32.totalorder %s23, 0
      %s26 = sadd.s32 %s25, 1
      %s27 = scalar_select %p24, %s25, %s26
      %p30 = pneg %p24
      %p31 = scmp.eq.s32.totalorder %s15, 1
      %p32 = por %p30, %p31
      %p33 = scmp.ne.s32.totalorder %s25, %s28
      %p34 = scmp.eq.s32.totalorder %s15, 0
      %p35 = por %p33, %p34
      %p36 = scmp.ne.s32.totalorder %s25, %s28
      %p37 = scmp.eq.s32.totalorder %s20, 1
      %p38 = por %p36, %p37
      %p39 = scmp.ne.s32.totalorder %s28, %s29
      %p40 = scmp.eq.s32.totalorder %s20, 0
      %p41 = por %p39, %p40
      %p42 = scmp.ne.s32.totalorder %s28, %s29
      %p43 = scmp.eq.s32.totalorder %s21, 1
      %p44 = por %p42, %p43
      %p46 = scmp.ne.s32.totalorder %s29, %s45
      %p47 = scmp.eq.s32.totalorder %s21, 0
      %p48 = por %p46, %p47
      %s50 = sadd.s32 %s49, 1
      %p53 = scmp.eq.s32.totalorder %s15, 1
      %p54 = scmp.ne.s32.totalorder %s49, %s51
      %p55 = scmp.eq.s32.totalorder %s15, 0
      %p56 = por %p54, %p55
      %p57 = scmp.ne.s32.totalorder %s49, %s51
      %p58 = scmp.eq.s32.totalorder %s20, 1
      %p59 = por %p57, %p58
      %p60 = scmp.ne.s32.totalorder %s51, %s52
      %p61 = scmp.eq.s32.totalorder %s20, 0
      %p62 = por %p60, %p61
      %p63 = scmp.ne.s32.totalorder %s51, %s52
      %p64 = scmp.eq.s32.totalorder %s21, 1
      %p65 = por %p63, %p64
      %p67 = scmp.ne.s32.totalorder %s52, %s66
      %p68 = scmp.eq.s32.totalorder %s21, 0
      %p69 = por %p67, %p68
      %s71 = sadd.s32 %s70, 1
      %p74 = scmp.eq.s32.totalorder %s15, 1
      %p75 = scmp.ne.s32.totalorder %s70, %s72
      %p76 = scmp.eq.s32.totalorder %s15, 0
      %p77 = por %p75, %p76
      %p78 = scmp.ne.s32.totalorder %s70, %s72
      %p79 = scmp.eq.s32.totalorder %s20, 1
      %p80 = por %p78, %p79
      %p81 = scmp.ne.s32.totalorder %s72, %s73
      %p82 = scmp.eq.s32.totalorder %s20, 0
      %p83 = por %p81, %p82
      %p84 = scmp.ne.s32.totalorder %s72, %s73
      %p85 = scmp.eq.s32.totalorder %s21, 1
      %p86 = por %p84, %p85
      %p88 = scmp.ne.s32.totalorder %s73, %s87
      %p89 = scmp.eq.s32.totalorder %s21, 0
      %p90 = por %p88, %p89
      %s92 = sadd.s32 %s91, 1
      %p95 = scmp.eq.s32.totalorder %s15, 1
      %p96 = scmp.ne.s32.totalorder %s91, %s93
      %p97 = scmp.eq.s32.totalorder %s15, 0
      %p98 = por %p96, %p97
      %p99 = scmp.ne.s32.totalorder %s91, %s93
      %p100 = scmp.eq.s32.totalorder %s20, 1
      %p101 = por %p99, %p100
      %p102 = scmp.ne.s32.totalorder %s93, %s94
      %p103 = scmp.eq.s32.totalorder %s20, 0
      %p104 = por %p102, %p103
      %p105 = scmp.ne.s32.totalorder %s93, %s94
      %p106 = scmp.eq.s32.totalorder %s21, 1
      %p107 = por %p105, %p106
      %p109 = scmp.ne.s32.totalorder %s94, %s108
      %p110 = scmp.eq.s32.totalorder %s21, 0
      %p111 = por %p109, %p110
      %s113 = sadd.s32 %s112, 1
      %p116 = scmp.eq.s32.totalorder %s15, 1
      %p117 = scmp.ne.s32.totalorder %s112, %s114
      %p118 = scmp.eq.s32.totalorder %s15, 0
      %p119 = por %p117, %p118
      %p120 = scmp.ne.s32.totalorder %s112, %s114
      %p121 = scmp.eq.s32.totalorder %s20, 1
      %p122 = por %p120, %p121
      %p123 = scmp.ne.s32.totalorder %s114, %s115
      %p124 = scmp.eq.s32.totalorder %s20, 0
      %p125 = por %p123, %p124
      %p126 = scmp.ne.s32.totalorder %s114, %s115
      %p127 = scmp.eq.s32.totalorder %s21, 1
      %p128 = por %p126, %p127
      %p130 = scmp.ne.s32.totalorder %s115, %s129
      %p131 = scmp.eq.s32.totalorder %s21, 0
      %p132 = por %p130, %p131
      %s133 = ssub.s32 %s15, %s22
      %p134 = scmp.eq.s32.totalorder %s133, 0
      %s136 = sadd.s32 %s135, 1
      %s137 = scalar_select %p134, %s135, %s136
      %p140 = pneg %p134
      %p141 = scmp.eq.s32.totalorder %s15, 1
      %p142 = por %p140, %p141
      %p143 = scmp.ne.s32.totalorder %s135, %s138
      %p144 = scmp.eq.s32.totalorder %s15, 0
      %p145 = por %p143, %p144
      %p146 = scmp.ne.s32.totalorder %s135, %s138
      %p147 = scmp.eq.s32.totalorder %s20, 1
      %p148 = por %p146, %p147
      %p149 = scmp.ne.s32.totalorder %s138, %s139
      %p150 = scmp.eq.s32.totalorder %s20, 0
      %p151 = por %p149, %p150
      %p152 = scmp.ne.s32.totalorder %s138, %s139
      %p153 = scmp.eq.s32.totalorder %s21, 1
      %p154 = por %p152, %p153
      %p156 = scmp.ne.s32.totalorder %s139, %s155
      %p157 = scmp.eq.s32.totalorder %s21, 0
      %p158 = por %p156, %p157
      %p159 = scmp.le.s32.totalorder 1, %s15
      %p160 = scmp.lt.s32.totalorder %s15, 3
      %p161 = pnand %p159, %p160
      %p162 = pneg %p161
      // Predicated region
      $region9: #{tpu_custom_call.1} parent=5 // pred_check
        _
      $region10: #{tpu_custom_call.1} parent=5 // pred_check_branch
        %164 = sbr.rel (%p161) target = $region12
      $region11: #{tpu_custom_call.1} parent=5 // pred_region
        %s165 = ssub.s32 %s15, 1
        // Predicated region
        $region13: #{tpu_custom_call.1} parent=11 // pred_check
          %p166 = pneg %p62
        $region14: #{tpu_custom_call.1} parent=11 // pred_check_branch
          %168 = sbr.rel (%p166) target = $region16
        $region15: #{tpu_custom_call.1} parent=11 // pred_region
          _
        $region16: #{tpu_custom_call.1} parent=11 // pred_fallthru
          _
        // Predicated region
        $region17: #{tpu_custom_call.1} parent=11 // pred_check
          %p169 = pneg %p83
        $region18: #{tpu_custom_call.1} parent=11 // pred_check_branch
          %171 = sbr.rel (%p169) target = $region20
        $region19: #{tpu_custom_call.1} parent=11 // pred_region
          _
        $region20: #{tpu_custom_call.1} parent=11 // pred_fallthru
          _
        // Predicated region
        $region21: #{tpu_custom_call.1} parent=11 // pred_check
          %p172 = pneg %p104
        $region22: #{tpu_custom_call.1} parent=11 // pred_check_branch
          %174 = sbr.rel (%p172) target = $region24
        $region23: #{tpu_custom_call.1} parent=11 // pred_region
          %176 = vsyncadd [#allocation3], 0
          %s177 = sshll.u32 %s3, 4
          %s178 = int_to_ptr.hbm [resolvable:$true] %s177
          %s179 = sshll.u32 [#allocation2], 4
          %s180 = int_to_ptr.vmem [resolvable:$true] %s179
          %185 = dma.hbm_to_vmem [thread:$0]  %s178, 2048, %s180, [#allocation3], 128, 128, 8
        $region24: #{tpu_custom_call.1} parent=11 // pred_fallthru
          _
        // Predicated region
        $region25: #{tpu_custom_call.1} parent=11 // pred_check
          %p186 = pneg %p125
        $region26: #{tpu_custom_call.1} parent=11 // pred_check_branch
          %188 = sbr.rel (%p186) target = $region28
        $region27: #{tpu_custom_call.1} parent=11 // pred_region
          _
        $region28: #{tpu_custom_call.1} parent=11 // pred_fallthru
          _
      $region12: #{tpu_custom_call.1} parent=5 // pred_fallthru
        _
      %p189 = scmp.lt.s32.totalorder %s15, 2
      // Predicated region
      $region29: #{tpu_custom_call.1} parent=5 // pred_check
        %p190 = pneg %p189
      $region30: #{tpu_custom_call.1} parent=5 // pred_check_branch
        %192 = sbr.rel (%p190) target = $region32
      $region31: #{tpu_custom_call.1} parent=5 // pred_region
        // Predicated region
        $region33: #{tpu_custom_call.1} parent=31 // pred_check
          %p193 = pneg %p35
        $region34: #{tpu_custom_call.1} parent=31 // pred_check_branch
          %195 = sbr.rel (%p193) target = $region36
        $region35: #{tpu_custom_call.1} parent=31 // pred_region
          %p196 = scmp.lt.s32.totalorder %s15, 1
          %s197 = scalar_select %p196, %s15, 1
          %s198 = smul.addr %s197, 8
          %s199 = scalar_lea.vmem %s0, %s198
        $region36: #{tpu_custom_call.1} parent=31 // pred_fallthru
          _
      $region32: #{tpu_custom_call.1} parent=5 // pred_fallthru
        _
      %p200 = scmp.le.s32.totalorder 1, %s15
      %p201 = scmp.lt.s32.totalorder %s15, 3
      %p202 = pnand %p200, %p201
      %p203 = pneg %p202
      // Predicated region
      $region37: #{tpu_custom_call.1} parent=5 // pred_check
        _
      $region38: #{tpu_custom_call.1} parent=5 // pred_check_branch
        %205 = sbr.rel (%p202) target = $region40
      $region39: #{tpu_custom_call.1} parent=5 // pred_region
        %s206 = ssub.s32 %s15, 1
        // Predicated region
        $region41: #{tpu_custom_call.1} parent=39 // pred_check
          %p207 = pneg %p104
        $region42: #{tpu_custom_call.1} parent=39 // pred_check_branch
          %209 = sbr.rel (%p207) target = $region44
        $region43: #{tpu_custom_call.1} parent=39 // pred_region
          %211 = dma.done [#allocation3], 2048
        $region44: #{tpu_custom_call.1} parent=39 // pred_fallthru
          _
        %p212 = scmp.lt.s32.totalorder %s20, 1
        %s213 = scalar_select %p212, %s20, 1
        %s214 = smul.addr %s213, 8
        %s215 = scalar_lea.vmem %s0, %s214
        %p216 = pneg %p41
        %p217 = pneg %p38
        %p218 = pneg %p62
        %p219 = pneg %p59
        %p220 = pneg %p83
        %p221 = pneg %p80
        %p222 = pneg %p104
        %p223 = pneg %p101
        %p224 = pneg %p125
        %p225 = pneg %p122
        %p226 = pneg %p151
        %p227 = pneg %p148
        %s228 = sand.u32 %s138, 1
        %s229 = scalar_lea.sflag [#allocation4], %s228
        %s230 = sand.u32 %s138, 1
        %s231 = smul.addr %s230, 8
        %s232 = scalar_lea.vmem [#allocation5], %s231
        %p233 = scmp.lt.s32.totalorder %s20, 1
        %s234 = scalar_select %p233, %s20, 1
        %s235 = smul.addr %s234, 8
        %s236 = scalar_lea.vmem %s0, %s235
        %v237 = vld [vmem:[%s236] sm:$0xff]
        %v238 = vld [vmem:[%s1] sm:$0xf]
        %v239 = vld [vmem:[%s2] sm:$0x1]
        %v241 = vperm.slane %v239, 0
        %vm243 = vcmask 31744
        %v245 = vsel %vm243, %v237, 0
        %vm247 = vcmask 1043456
        %v249 = vsel %vm247, %v238, 0
        %251 = vmatpush.msra.mxu0 0.0
        %252 = vmatpush.msra.mxu0 0.0
        %253 = vmatpush.msra.mxu0 0.0
        %254 = vmatpush.msra.mxu0 0.0
        %255 = vmatpush.msra.mxu0 0.0
        %256 = vmatpush.msra.mxu0 0.0
        %257 = vmatpush.msra.mxu0 0.0
        %258 = vmatpush.msra.mxu0 0.0
        %259 = vmatpush.msra.mxu0 0.0
        %260 = vmatpush.msra.mxu0 0.0
        %261 = vmatpush.msra.mxu0 0.0
        %262 = vmatpush.msra.mxu0 0.0
        %263 = vmatpush.msra.mxu0 0.0
        %264 = vmatpush.msra.mxu0 0.0
        %265 = vmatpush.msra.mxu0 0.0
        %266 = vmatpush.msra.mxu0 %v249
        %267 = vmatmul.f32.gmra.mxu0 %v245
        %v268 = vpop.f32.mrf.mxu0
        %v269 = vadd.f32 %v241, %v268
        %270 = vdwg.mxu0
        %v271 = vmax.f32 %v269, 0.0
        %v272 = vld [vmem:[#allocation2] sm:$0xff]
        %v273 = vld [vmem:[#allocation2 + $0x8] sm:$0xff]
        %v274 = vld [vmem:[#allocation2 + $0x10] sm:$0xff]
        %v275 = vld [vmem:[#allocation2 + $0x18] sm:$0xff]
        %v276 = vld [vmem:[#allocation2 + $0x20] sm:$0xff]
        %v277 = vld [vmem:[#allocation2 + $0x28] sm:$0xff]
        %v278 = vld [vmem:[#allocation2 + $0x30] sm:$0xff]
        %v279 = vld [vmem:[#allocation2 + $0x38] sm:$0xff]
        %v280 = vld [vmem:[#allocation2 + $0x40] sm:$0xff]
        %v281 = vld [vmem:[#allocation2 + $0x48] sm:$0xff]
        %v282 = vld [vmem:[#allocation2 + $0x50] sm:$0xff]
        %v283 = vld [vmem:[#allocation2 + $0x58] sm:$0xff]
        %v284 = vld [vmem:[#allocation2 + $0x60] sm:$0xff]
        %v285 = vld [vmem:[#allocation2 + $0x68] sm:$0xff]
        %v286 = vld [vmem:[#allocation2 + $0x70] sm:$0xff]
        %v287 = vld [vmem:[#allocation2 + $0x78] sm:$0xff]
        %v288 = vld [vmem:[%s4] sm:$0x1]
        %v290 = vperm.slane %v288, 0
        %292 = vmatpush.msra.mxu0 %v287
        %293 = vmatpush.msra.mxu0 %v286
        %294 = vmatpush.msra.mxu0 %v285
        %295 = vmatpush.msra.mxu0 %v284
        %296 = vmatpush.msra.mxu0 %v283
        %297 = vmatpush.msra.mxu0 %v282
        %298 = vmatpush.msra.mxu0 %v281
        %299 = vmatpush.msra.mxu0 %v280
        %300 = vmatpush.msra.mxu0 %v279
        %301 = vmatpush.msra.mxu0 %v278
        %302 = vmatpush.msra.mxu0 %v277
        %303 = vmatpush.msra.mxu0 %v276
        %304 = vmatpush.msra.mxu0 %v275
        %305 = vmatpush.msra.mxu0 %v274
        %306 = vmatpush.msra.mxu0 %v273
        %307 = vmatpush.msra.mxu0 %v272
        %308 = vmatmul.f32.gmra.mxu0 %v271
        %v309 = vpop.f32.mrf.mxu0
        %v310 = vadd.f32 %v290, %v309
        %311 = vdwg.mxu0
        %312 = vmax.xlane.f32.xlu0 %v310
        %v313 = vpop.xlane.xlu0 %312
        %v314 = vsub.f32 %v310, %v313
        %v315 = vmul.f32 %v314, 1.442695
        %v316 = vpow.pop %v315
        %317 = vadd.xlane.f32.xlu0 %v316
        %v318 = vpop.xlane.xlu0 %317
        %v319 = vrcp.pop %v318
        %v320 = vmul.f32 %v318, %v319
        %v321 = vsub.f32 2.0, %v320
        %v322 = vmul.f32 %v319, %v321
        %v323 = vmul.f32 %v316, %v322
        %324 = vst [vmem:[%s232] sm:$0xff] %v323
        %s325 = sand.u32 %s138, 1
        %s326 = scalar_lea.sflag [#allocation4], %s325
        %s327 = sand.u32 %s138, 1
        %s328 = smul.addr %s327, 8
        %s329 = scalar_lea.vmem [#allocation5], %s328
        // Predicated region
        $region45: #{tpu_custom_call.1} parent=39 // pred_check
          %p330 = pneg %p148
        $region46: #{tpu_custom_call.1} parent=39 // pred_check_branch
          %332 = sbr.rel (%p330) target = $region48
        $region47: #{tpu_custom_call.1} parent=39 // pred_region
          %334 = vsyncadd %s326, 0
          %s335 = smul.addr %s20, 8
          %s336 = scalar_lea.hbm %s5, %s335
          %s338 = sshll.u32 %s329, 4
          %s339 = int_to_ptr.vmem [resolvable:$true] %s338
          %s340 = sshll.u32 %s336, 4
          %s341 = int_to_ptr.hbm [resolvable:$true] %s340
          %343 = dma.vmem_to_hbm [thread:$0]  %s339, 128, %s341, %s326
        $region48: #{tpu_custom_call.1} parent=39 // pred_fallthru
          _
      $region40: #{tpu_custom_call.1} parent=5 // pred_fallthru
        _
      %p344 = scmp.le.s32.totalorder 2, %s15
      // Predicated region
      $region49: #{tpu_custom_call.1} parent=5 // pred_check
        %p345 = pneg %p344
      $region50: #{tpu_custom_call.1} parent=5 // pred_check_branch
        %347 = sbr.rel (%p345) target = $region52
      $region51: #{tpu_custom_call.1} parent=5 // pred_region
        %s348 = ssub.s32 %s15, 2
        // Predicated region
        $region53: #{tpu_custom_call.1} parent=51 // pred_check
          %p349 = pneg %p154
        $region54: #{tpu_custom_call.1} parent=51 // pred_check_branch
          %351 = sbr.rel (%p349) target = $region56
        $region55: #{tpu_custom_call.1} parent=51 // pred_region
          %s352 = sand.u32 %s139, 1
          %s353 = scalar_lea.sflag [#allocation4], %s352
          %s354 = sand.u32 %s139, 1
          %s355 = smul.addr %s354, 8
          %s356 = scalar_lea.vmem [#allocation5], %s355
          %358 = dma.done %s353, 128
        $region56: #{tpu_custom_call.1} parent=51 // pred_fallthru
          _
      $region52: #{tpu_custom_call.1} parent=5 // pred_fallthru
        _
    $region6: #{tpu_custom_call.1} parent=1 // loop_footer
      %s19 = sadd.s32 1, %s15
    $region7: #{tpu_custom_call.1} parent=1 // loop_footer_branch
      %14 = sbr.rel target = $region3
    $region8: #{tpu_custom_call.1} parent=1 // loop_exit
      _
    %359 = vsyncpa [#allocation3], 1
    %s360 = scalar_lea.sflag [#allocation3], 1
    %361 = vsyncpa %s360, 1
    %362 = vsyncpa [#allocation4], 1
    %s363 = scalar_lea.sflag [#allocation4], 1
    %364 = vsyncpa %s363, 1

</llo_original>
